<compile_context>
chip_gen: v5e
topology: v5e:2x2
jax: 0.10.0
libtpu: 0.0.40
codegen_flags: <defaults>
</compile_context>

<pallas_src>
import functools

import jax
import jax.numpy as jnp
from jax.experimental import pallas as pl
from jax.experimental.pallas import tpu as pltpu

ALPHA = 1.0
GAMMA = 2
LANE = 128
SUBLANE = 8
MAX_TILE_ROWS = 1024  # (1024,128) f32 block = 512 KiB; 3 inputs x 2 buffers = 3 MiB VMEM


def _focal_loss_kernel(x_ref, t_ref, w_ref, o_ref, *, tile_rows, n_rows):
    i = pl.program_id(0)

    x = x_ref[...].astype(jnp.float32)
    t = t_ref[...].astype(jnp.float32)
    w = w_ref[...].astype(jnp.float32)

    # binary_cross_entropy (no reduction) with weight; PyTorch clamps log at -100.
    log_x = jnp.maximum(jnp.log(x), -100.0)
    log_1mx = jnp.maximum(jnp.log(1.0 - x), -100.0)
    bce = -w * (t * log_x + (1.0 - t) * log_1mx)

    pt = jnp.exp(-bce)
    one_minus_pt = 1.0 - pt
    if GAMMA == 2:
        mod = one_minus_pt * one_minus_pt  # avoids pow -> exp(gamma*log(.)) on the EUP
    else:
        mod = one_minus_pt ** GAMMA
    f_loss = ALPHA * mod * bce

    # Zero out rows past the valid extent (ragged last grid block).  Static
    # skip when the tiling is exact.
    if n_rows % tile_rows != 0:
        row_idx = i * tile_rows + jax.lax.broadcasted_iota(
            jnp.int32, (tile_rows, LANE), 0
        )
        f_loss = jnp.where(row_idx < n_rows, f_loss, 0.0)

    # Partial sums over the leading (non-minor) axis only: elementwise vreg adds.
    # The single cross-lane/sublane reduce happens once, in the JAX epilogue.
    o_ref[...] = f_loss.reshape(tile_rows // SUBLANE, SUBLANE, LANE).sum(axis=0)


def focal_loss(inputs, targets, weights):
    """Mean focal loss over all elements (matches PyTorch FocalLoss defaults)."""
    n_valid = inputs.size
    x = inputs.reshape(-1)
    t = targets.reshape(-1)
    w = weights.reshape(-1)

    # Rarely-taken ragged path: pad to a multiple of 8*128 with neutral values
    # (weight = 0 => f_loss = 0).  Common NCHW sizes hit the zero-copy path.
    chunk = SUBLANE * LANE
    pad = (-n_valid) % chunk
    if pad:
        x = jnp.concatenate([x, jnp.full((pad,), 0.5, x.dtype)])
        t = jnp.concatenate([t, jnp.zeros((pad,), t.dtype)])
        w = jnp.concatenate([w, jnp.zeros((pad,), w.dtype)])

    rows = x.size // LANE  # multiple of 8
    x = x.reshape(rows, LANE)
    t = t.reshape(rows, LANE)
    w = w.reshape(rows, LANE)

    tile_rows = min(MAX_TILE_ROWS, rows)  # multiple of 8, never exceeds the array
    num_blocks = pl.cdiv(rows, tile_rows)

    in_spec = pl.BlockSpec((tile_rows, LANE), lambda i: (i, 0))
    partials = pl.pallas_call(
        functools.partial(_focal_loss_kernel, tile_rows=tile_rows, n_rows=rows),
        out_shape=jax.ShapeDtypeStruct((num_blocks * SUBLANE, LANE), jnp.float32),
        grid_spec=pltpu.PrefetchScalarGridSpec(
            num_scalar_prefetch=0,
            grid=(num_blocks,),
            in_specs=[in_spec, in_spec, in_spec],
            out_specs=pl.BlockSpec((SUBLANE, LANE), lambda i: (i, 0)),
        ),
        compiler_params=pltpu.CompilerParams(
            dimension_semantics=("parallel",),
        ),
    )(x, t, w)

    return jnp.sum(partials) / jnp.float32(n_valid)


def _reference(inputs, targets, weights):
    x = inputs.astype(jnp.float32)
    t = targets.astype(jnp.float32)
    w = weights.astype(jnp.float32)
    bce = -w * (t * jnp.maximum(jnp.log(x), -100.0)
                + (1.0 - t) * jnp.maximum(jnp.log(1.0 - x), -100.0))
    pt = jnp.exp(-bce)
    return jnp.mean(ALPHA * (1.0 - pt) ** GAMMA * bce)


if __name__ == "__main__":
    key = jax.random.PRNGKey(0)
    k1, k2, k3 = jax.random.split(key, 3)
    shape = (2, 4, 16, 16)  # NCHW

    # inputs are probabilities (logits=False), targets in [0,1], positive weights
    inputs = jax.random.uniform(k1, shape, jnp.float32, minval=1e-3, maxval=1.0 - 1e-3)
    targets = (jax.random.uniform(k2, shape, jnp.float32) > 0.5).astype(jnp.float32)
    weights = jax.random.uniform(k3, shape, jnp.float32, minval=0.5, maxval=1.5)

    out = focal_loss(inputs, targets, weights)
    jax.block_until_ready(out)

    ref = _reference(inputs, targets, weights)
    assert jnp.allclose(out, ref, rtol=1e-5, atol=1e-6), (out, ref)
    print("KERNEL_OK")
</pallas_src>

<mosaic_0001>
module attributes {stable_mosaic.version = 11 : i64} {
  func.func @_focal_loss_kernel(%arg0: i32, %arg1: memref<16x128xf32, #tpu.memory_space<vmem>>, %arg2: memref<16x128xf32, #tpu.memory_space<vmem>>, %arg3: memref<16x128xf32, #tpu.memory_space<vmem>>, %arg4: memref<8x128xf32, #tpu.memory_space<vmem>>) attributes {dimension_semantics = [#tpu.dimension_semantics<parallel>], iteration_bounds = array<i64: 1>, scalar_prefetch = 0 : i64, scratch_operands = 0 : i64, tpu.core_type = #tpu.core_type<tc>, window_params = [{transform_indices = @transform_0, window_bounds = array<i64: 16, 128>}, {transform_indices = @transform_1, window_bounds = array<i64: 16, 128>}, {transform_indices = @transform_2, window_bounds = array<i64: 16, 128>}, {transform_indices = @transform_3, window_bounds = array<i64: 8, 128>}]} {
    %c0 = arith.constant 0 : index
    %c0_0 = arith.constant 0 : index
    %0 = vector.load %arg1[%c0, %c0_0] : memref<16x128xf32, #tpu.memory_space<vmem>>, vector<16x128xf32>
    %c0_1 = arith.constant 0 : index
    %c0_2 = arith.constant 0 : index
    %1 = vector.load %arg2[%c0_1, %c0_2] : memref<16x128xf32, #tpu.memory_space<vmem>>, vector<16x128xf32>
    %c0_3 = arith.constant 0 : index
    %c0_4 = arith.constant 0 : index
    %2 = vector.load %arg3[%c0_3, %c0_4] : memref<16x128xf32, #tpu.memory_space<vmem>>, vector<16x128xf32>
    %3 = math.log %0 : vector<16x128xf32>
    %cst = arith.constant -1.000000e+02 : f32
    %4 = vector.broadcast %cst : f32 to vector<16x128xf32>
    %5 = arith.maximumf %3, %4 : vector<16x128xf32>
    %cst_5 = arith.constant 1.000000e+00 : f32
    %6 = vector.broadcast %cst_5 : f32 to vector<16x128xf32>
    %7 = arith.subf %6, %0 : vector<16x128xf32>
    %8 = math.log %7 : vector<16x128xf32>
    %cst_6 = arith.constant -1.000000e+02 : f32
    %9 = vector.broadcast %cst_6 : f32 to vector<16x128xf32>
    %10 = arith.maximumf %8, %9 : vector<16x128xf32>
    %cst_7 = arith.constant 0.000000e+00 : f32
    %11 = vector.broadcast %cst_7 : f32 to vector<16x128xf32>
    %12 = arith.subf %11, %2 : vector<16x128xf32>
    %13 = arith.mulf %1, %5 : vector<16x128xf32>
    %cst_8 = arith.constant 1.000000e+00 : f32
    %14 = vector.broadcast %cst_8 : f32 to vector<16x128xf32>
    %15 = arith.subf %14, %1 : vector<16x128xf32>
    %16 = arith.mulf %15, %10 : vector<16x128xf32>
    %17 = arith.addf %13, %16 : vector<16x128xf32>
    %18 = arith.mulf %12, %17 : vector<16x128xf32>
    %cst_9 = arith.constant 0.000000e+00 : f32
    %19 = vector.broadcast %cst_9 : f32 to vector<16x128xf32>
    %20 = arith.subf %19, %18 : vector<16x128xf32>
    %21 = math.exp %20 : vector<16x128xf32>
    %cst_10 = arith.constant 1.000000e+00 : f32
    %22 = vector.broadcast %cst_10 : f32 to vector<16x128xf32>
    %23 = arith.subf %22, %21 : vector<16x128xf32>
    %24 = arith.mulf %23, %23 : vector<16x128xf32>
    %cst_11 = arith.constant 1.000000e+00 : f32
    %25 = vector.broadcast %cst_11 : f32 to vector<16x128xf32>
    %26 = arith.mulf %25, %24 : vector<16x128xf32>
    %27 = arith.mulf %26, %18 : vector<16x128xf32>
    %28 = vector.shape_cast %27 : vector<16x128xf32> to vector<2x8x128xf32>
    %cst_12 = arith.constant dense<0.000000e+00> : vector<8x128xf32>
    %29 = vector.multi_reduction <add>, %28, %cst_12 [0] : vector<2x8x128xf32> to vector<8x128xf32>
    %c0_13 = arith.constant 0 : index
    %c0_14 = arith.constant 0 : index
    %30 = vector.load %arg4[%c0_13, %c0_14] : memref<8x128xf32, #tpu.memory_space<vmem>>, vector<8x128xf32>
    tpu.vector_store %arg4[%c0_13, %c0_14], %29 {strides = array<i32>} : memref<8x128xf32, #tpu.memory_space<vmem>>, vector<8x128xf32>,
    return
  }
  func.func @transform_0(%arg0: i32) -> (i32, i32) {
    %c0_i32 = arith.constant 0 : i32
    %c0_i32_0 = arith.constant 0 : i32
    return %arg0, %c0_i32 : i32, i32
  }
  func.func @transform_1(%arg0: i32) -> (i32, i32) {
    %c0_i32 = arith.constant 0 : i32
    %c0_i32_0 = arith.constant 0 : i32
    return %arg0, %c0_i32 : i32, i32
  }
  func.func @transform_2(%arg0: i32) -> (i32, i32) {
    %c0_i32 = arith.constant 0 : i32
    %c0_i32_0 = arith.constant 0 : i32
    return %arg0, %c0_i32 : i32, i32
  }
  func.func @transform_3(%arg0: i32) -> (i32, i32) {
    %c0_i32 = arith.constant 0 : i32
    %c0_i32_0 = arith.constant 0 : i32
    return %arg0, %c0_i32 : i32, i32
  }
}

</mosaic_0001>

<llo_original>
// kernel: tpu_custom_call.1
$region0: #{tpu_custom_call.1}
  #allocation0 [shape = 'u32[]', space=smem, size = 0x4, offset = 0x4, fixed_abs, tag = 'smem constant byte address 0x4 - core index']
  #allocation1 [shape = 'u32[72,128]{1,0:T(1,128)}', space=vmem, size = 0x9000, scoped, tag = 'internal scratch']
  %s0 = inlined_call_operand.hbm [shape: f32[16,128], index: 0, kind: input, shape index: {}]
  %s1 = inlined_call_operand.hbm [shape: f32[16,128], index: 1, kind: input, shape index: {}]
  %s2 = inlined_call_operand.hbm [shape: f32[16,128], index: 2, kind: input, shape index: {}]
  %s3 = inlined_call_operand.hbm [shape: f32[8,128], index: 3, kind: output, shape index: {}]
  %s4 = sld [smem:[#allocation0]]
  $region34: #{tpu_custom_call.1} parent=0
    _
  %s6 = ssub.s32 1, %s4
  %s7 = scalar_select 0, %s6, %s4
  $region1: #{tpu_custom_call.1} parent=0
    #allocation2 [shape = 'u8[8192]{0}', space=vmem, size = 0x2000, scoped, tag = 'input window, operand 0, single buffered']
    #allocation3 [shape = 's32[1]{0}', space=sflag, size = 0x4, scoped, tag = 'scoped memory for tpu_custom_call.1']
    #allocation4 [shape = 's32[1]{0}', space=sflag, size = 0x4, scoped, tag = 'scoped memory for tpu_custom_call.1']
    #allocation5 [shape = 'u8[8192]{0}', space=vmem, size = 0x2000, scoped, tag = 'input window, operand 1, single buffered']
    #allocation6 [shape = 's32[1]{0}', space=sflag, size = 0x4, scoped, tag = 'scoped memory for tpu_custom_call.1']
    #allocation7 [shape = 'u8[8192]{0}', space=vmem, size = 0x2000, scoped, tag = 'input window, operand 2, single buffered']
    #allocation8 [shape = 'u8[4096]{0}', space=vmem, size = 0x1000, scoped, tag = 'output window, operand 0, single buffered']
    %8 = vsyncpa [#allocation3], 0
    %9 = vsyncpa [#allocation6], 0
    %10 = vsyncpa [#allocation4], 0
    // Predicated region
    $region2: #{tpu_custom_call.1} parent=1 // pred_check
      _
    $region3: #{tpu_custom_call.1} parent=1 // pred_check_branch
      %12 = sbr.rel (0) target = $region5
    $region4: #{tpu_custom_call.1} parent=1 // pred_region
      %14 = vsyncadd [#allocation3], 0
      %s15 = sshll.u32 %s0, 4
      %s16 = int_to_ptr.hbm [resolvable:$true] %s15
      %s17 = sshll.u32 [#allocation2], 4
      %s18 = int_to_ptr.vmem [resolvable:$true] %s17
      %23 = dma.hbm_to_vmem [thread:$0]  %s16, 256, %s18, [#allocation3], 128, 128, 8
    $region5: #{tpu_custom_call.1} parent=1 // pred_fallthru
      _
    // Predicated region
    $region6: #{tpu_custom_call.1} parent=1 // pred_check
      _
    $region7: #{tpu_custom_call.1} parent=1 // pred_check_branch
      %25 = sbr.rel (0) target = $region9
    $region8: #{tpu_custom_call.1} parent=1 // pred_region
      %27 = vsyncadd [#allocation6], 0
      %s28 = sshll.u32 %s1, 4
      %s29 = int_to_ptr.hbm [resolvable:$true] %s28
      %s30 = sshll.u32 [#allocation5], 4
      %s31 = int_to_ptr.vmem [resolvable:$true] %s30
      %36 = dma.hbm_to_vmem [thread:$0]  %s29, 256, %s31, [#allocation6], 128, 128, 8
    $region9: #{tpu_custom_call.1} parent=1 // pred_fallthru
      _
    // Predicated region
    $region10: #{tpu_custom_call.1} parent=1 // pred_check
      _
    $region11: #{tpu_custom_call.1} parent=1 // pred_check_branch
      %38 = sbr.rel (0) target = $region13
    $region12: #{tpu_custom_call.1} parent=1 // pred_region
      %40 = vsyncadd [#allocation6], 0
      %s41 = sshll.u32 %s2, 4
      %s42 = int_to_ptr.hbm [resolvable:$true] %s41
      %s43 = sshll.u32 [#allocation7], 4
      %s44 = int_to_ptr.vmem [resolvable:$true] %s43
      %49 = dma.hbm_to_vmem [thread:$0]  %s42, 256, %s44, [#allocation6], 128, 128, 8
    $region13: #{tpu_custom_call.1} parent=1 // pred_fallthru
      _
    // Predicated region
    $region14: #{tpu_custom_call.1} parent=1 // pred_check
      _
    $region15: #{tpu_custom_call.1} parent=1 // pred_check_branch
      %51 = sbr.rel (0) target = $region17
    $region16: #{tpu_custom_call.1} parent=1 // pred_region
      %53 = dma.done [#allocation3], 256
    $region17: #{tpu_custom_call.1} parent=1 // pred_fallthru
      _
    // Predicated region
    $region18: #{tpu_custom_call.1} parent=1 // pred_check
      _
    $region19: #{tpu_custom_call.1} parent=1 // pred_check_branch
      %55 = sbr.rel (0) target = $region21
    $region20: #{tpu_custom_call.1} parent=1 // pred_region
      %57 = dma.done [#allocation6], 256
    $region21: #{tpu_custom_call.1} parent=1 // pred_fallthru
      _
    // Predicated region
    $region22: #{tpu_custom_call.1} parent=1 // pred_check
      _
    $region23: #{tpu_custom_call.1} parent=1 // pred_check_branch
      %59 = sbr.rel (0) target = $region25
    $region24: #{tpu_custom_call.1} parent=1 // pred_region
      %61 = dma.done [#allocation6], 256
    $region25: #{tpu_custom_call.1} parent=1 // pred_fallthru
      _
    %v62 = vld [vmem:[#allocation2] sm:$0xff]
    %v63 = vld [vmem:[#allocation2 + $0x8] sm:$0xff]
    %v64 = vld [vmem:[#allocation5] sm:$0xff]
    %v65 = vld [vmem:[#allocation5 + $0x8] sm:$0xff]
    %v66 = vld [vmem:[#allocation7] sm:$0xff]
    %v67 = vld [vmem:[#allocation7 + $0x8] sm:$0xff]
    %v68 = vlog2.pop %v62
    %v69 = vmul.f32 %v68, 0.6931472
    %v70 = vlog2.pop %v63
    %v71 = vmul.f32 %v70, 0.6931472
    %v72 = vmax.f32 %v69, -100.0
    %v73 = vmax.f32 %v71, -100.0
    %v74 = vsub.f32 1.0, %v62
    %v75 = vsub.f32 1.0, %v63
    %v76 = vlog2.pop %v74
    %v77 = vmul.f32 %v76, 0.6931472
    %v78 = vlog2.pop %v75
    %v79 = vmul.f32 %v78, 0.6931472
    %v80 = vmax.f32 %v77, -100.0
    %v81 = vmax.f32 %v79, -100.0
    %v82 = vsub.f32 0.0, %v66
    %v83 = vsub.f32 0.0, %v67
    %v84 = vmul.f32 %v64, %v72
    %v85 = vmul.f32 %v65, %v73
    %v86 = vsub.f32 1.0, %v64
    %v87 = vsub.f32 1.0, %v65
    %v88 = vmul.f32 %v86, %v80
    %v89 = vmul.f32 %v87, %v81
    %v90 = vadd.f32 %v84, %v88
    %v91 = vadd.f32 %v85, %v89
    %v92 = vmul.f32 %v82, %v90
    %v93 = vmul.f32 %v83, %v91
    %v94 = vsub.f32 0.0, %v92
    %v95 = vsub.f32 0.0, %v93
    %v96 = vmul.f32 %v94, 1.442695
    %v97 = vpow.pop %v96
    %v98 = vmul.f32 %v95, 1.442695
    %v99 = vpow.pop %v98
    %v100 = vsub.f32 1.0, %v97
    %v101 = vsub.f32 1.0, %v99
    %v102 = vmul.f32 %v100, %v100
    %v103 = vmul.f32 %v101, %v101
    %v104 = vmul.f32 %v102, %v92
    %v105 = vmul.f32 %v103, %v93
    %v106 = vadd.f32 %v104, %v105
    %107 = vst [vmem:[#allocation8] sm:$0xff] %v106
    // Predicated region
    $region26: #{tpu_custom_call.1} parent=1 // pred_check
      _
    $region27: #{tpu_custom_call.1} parent=1 // pred_check_branch
      %109 = sbr.rel (0) target = $region29
    $region28: #{tpu_custom_call.1} parent=1 // pred_region
      %111 = vsyncadd [#allocation4], 0
      %s113 = sshll.u32 [#allocation8], 4
      %s114 = int_to_ptr.vmem [resolvable:$true] %s113
      %s115 = sshll.u32 %s3, 4
      %s116 = int_to_ptr.hbm [resolvable:$true] %s115
      %118 = dma.vmem_to_hbm [thread:$0]  %s114, 128, %s116, [#allocation4]
    $region29: #{tpu_custom_call.1} parent=1 // pred_fallthru
      _
    // Predicated region
    $region30: #{tpu_custom_call.1} parent=1 // pred_check
      _
    $region31: #{tpu_custom_call.1} parent=1 // pred_check_branch
      %120 = sbr.rel (0) target = $region33
    $region32: #{tpu_custom_call.1} parent=1 // pred_region
      %122 = dma.done [#allocation4], 128
    $region33: #{tpu_custom_call.1} parent=1 // pred_fallthru
      _
    %123 = vsyncpa [#allocation3], 1
    %124 = vsyncpa [#allocation6], 1
    %125 = vsyncpa [#allocation4], 1

</llo_original>
